<compile_context>
chip_gen: v7x
topology: tpu7x:2x2x1
jax: 0.10.0
libtpu: 0.0.40
codegen_flags: <defaults>
</compile_context>

<pallas_src>
import math

import jax
import jax.numpy as jnp
from jax.experimental import pallas as pl
from jax.experimental.pallas import tpu as pltpu


_TILE_BUDGET_BYTES = 8 * 1024 * 1024   # double-buffered working-set target (all gens)
_MAX_FOLD = 8                          # max batch rows folded into the lane axis


def _vmem_limit_bytes():
    """Generation-aware scoped-VMEM limit: ~32 MiB on v7x (64 MiB VMEM per TC),
    ~48 MiB on v5e/v6e (128 MiB VMEM)."""
    try:
        cap = int(pltpu.get_tpu_info().vmem_capacity_bytes)
    except Exception:
        cap = 64 * 1024 * 1024  # conservative fallback (treat as v7x)
    return max(16 * 1024 * 1024, min(cap // 2, 48 * 1024 * 1024))


def _choose_fold(batch, p):
    """Smallest g (<= _MAX_FOLD, dividing batch) such that (g * p) % 128 == 0.

    Folding g batch rows into the lane axis makes the (R, C) slabs lane-dense
    (last dim a multiple of 128), turning masked vst.msk output stores into
    full-width stores. Returns 1 when no cheap fold exists (still correct).
    """
    if p % 128 == 0:
        return 1
    g0 = 128 // math.gcd(p, 128)
    g = g0
    while g <= _MAX_FOLD:
        if batch % g == 0:
            return g
        g += g0
    # TODO(synk): pad the lane axis for pathological P/batch combos instead of
    # falling back to masked stores.
    return 1


def _pick_row_tile(rows, per_row_bytes, budget):
    """Largest row tile whose working set fits the budget, aiming for >= ~4 grid
    steps when the row count allows (per-step overhead ~0.35 us; extra steps buy
    real DMA/compute/writeback overlap)."""
    tr = max(1, budget // max(per_row_bytes, 1))
    tr = min(tr, max(8, pl.cdiv(rows, 4)))
    if rows <= 8 or tr >= rows:
        return rows
    return max(8, (tr // 8) * 8)  # second-to-last block dim: multiple of 8


def _layer_sum(d_ref, n):
    """torch.cat(datt_ls, 0).sum(0) — unrolled, one f32 layer slice live at a time."""
    acc = d_ref[0].astype(jnp.float32)
    for l in range(1, n):
        acc = acc + d_ref[l].astype(jnp.float32)
    return acc


def _block_hit_count(dsum, g, p, total_rows, row_tile):
    """Per-block partial of (#batch rows whose summed datt > 0).

    Each lane-row of `dsum` holds g batch rows as contiguous P-wide segments.
    NOTE: summation order differs from PyTorch's cat().sum(); values exactly at
    zero could in principle flip the strict `> 0` flag (float associativity).
    """
    i = pl.program_id(0)
    tr = dsum.shape[0]
    row_idx = jax.lax.broadcasted_iota(jnp.int32, (tr, 1), 0) + i * row_tile
    valid = row_idx < total_rows            # mask padded rows of the edge block
    cnt = jnp.zeros((1, 1), jnp.int32)
    for s in range(g):                      # g is static and small (<= _MAX_FOLD)
        seg = jnp.sum(dsum[:, s * p:(s + 1) * p], axis=-1, keepdims=True)  # (tr,1)
        hits = jnp.where(jnp.logical_and(valid, seg > 0.0),
                         jnp.int32(1), jnp.int32(0))
        cnt = cnt + jnp.sum(hits, axis=0, keepdims=True)
    return cnt


def _constrain_fused(score1, score2, datt1_stack, datt2_stack, rho_w):
    """Fused: both score paths + per-block hit partials in one pipelined pallas_call."""
    B, L1, L2 = score1.shape
    n1 = datt1_stack.shape[0]
    n2 = datt2_stack.shape[0]
    P = L1 * L2
    assert score2.shape == (B, L2, L1)
    assert datt1_stack.shape == (n1, B, L1, L2)
    assert datt2_stack.shape == (n2, B, L2, L1)

    g = _choose_fold(B, P)
    R, C = B // g, g * P

    # Free row-major relayout: last dim is lane-dense (multiple of 128 when g>1).
    s1 = score1.reshape(R, C)
    s2 = score2.reshape(R, C)
    d1 = datt1_stack.reshape(n1, R, C)
    d2 = datt2_stack.reshape(n2, R, C)

    # dtype-aware per-row bytes: in/out score slabs + layer stacks, double
    # buffered, plus f32 temporaries (two layer-sum accumulators + one upcast).
    per_row = C * (2 * score1.dtype.itemsize + 2 * score2.dtype.itemsize
                   + n1 * datt1_stack.dtype.itemsize
                   + n2 * datt2_stack.dtype.itemsize)
    per_row = 2 * per_row + 3 * C * 4
    tr = _pick_row_tile(R, per_row, _TILE_BUDGET_BYTES)
    steps = pl.cdiv(R, tr)

    def kernel(rho_ref, s1_ref, s2_ref, d1_ref, d2_ref, o1_ref, o2_ref, hit_ref):
        rho = rho_ref[0]
        acc1 = _layer_sum(d1_ref, n1)
        o1_ref[...] = (s1_ref[...].astype(jnp.float32) + rho * acc1).astype(o1_ref.dtype)
        acc2 = _layer_sum(d2_ref, n2)
        o2_ref[...] = (s2_ref[...].astype(jnp.float32) + rho * acc2).astype(o2_ref.dtype)
        # w_hit_cnt only uses datt2 (score1 path computes no hit, as in PyTorch).
        hit_ref[...] = _block_hit_count(acc2, g, P, R, tr)

    out1, out2, hit = pl.pallas_call(
        kernel,
        out_shape=(
            jax.ShapeDtypeStruct((R, C), score1.dtype),
            jax.ShapeDtypeStruct((R, C), score2.dtype),
            jax.ShapeDtypeStruct((steps, 1), jnp.int32),   # per-block partials
        ),
        grid=(steps,),
        in_specs=[
            pl.BlockSpec((1,), lambda i: (0,), memory_space=pltpu.SMEM),  # rho_w
            pl.BlockSpec((tr, C), lambda i: (i, 0)),                      # score1
            pl.BlockSpec((tr, C), lambda i: (i, 0)),                      # score2
            pl.BlockSpec((n1, tr, C), lambda i: (0, i, 0)),               # datt1 stack
            pl.BlockSpec((n2, tr, C), lambda i: (0, i, 0)),               # datt2 stack
        ],
        out_specs=(
            pl.BlockSpec((tr, C), lambda i: (i, 0)),
            pl.BlockSpec((tr, C), lambda i: (i, 0)),
            pl.BlockSpec((1, 1), lambda i: (i, 0)),   # distinct block per step -> no races
        ),
        compiler_params=pltpu.CompilerParams(
            # No cross-step carries -> both v7x TensorCores can share the grid.
            dimension_semantics=("parallel",),
            vmem_limit_bytes=_vmem_limit_bytes(),
        ),
        cost_estimate=pl.CostEstimate(
            flops=int(2 * B * P * (n1 + n2 + 2)),
            transcendentals=0,
            bytes_accessed=int(2 * s1.nbytes + 2 * s2.nbytes + d1.nbytes + d2.nbytes),
        ),
    )(rho_w, s1, s2, d1, d2)

    w_hit_cnt = jnp.sum(hit).astype(jnp.int32)   # tiny reduce over per-block partials
    return out1.reshape(B, L1, L2), out2.reshape(B, L2, L1), w_hit_cnt


def _constrain_single(score, datt_stack, rho_w, with_hit):
    """Single score path; hit partials only when requested (score2 path)."""
    B, La, Lb = score.shape
    n = datt_stack.shape[0]
    P = La * Lb
    g = _choose_fold(B, P)
    R, C = B // g, g * P
    s = score.reshape(R, C)
    d = datt_stack.reshape(n, R, C)

    per_row = C * (2 * score.dtype.itemsize + n * datt_stack.dtype.itemsize)
    per_row = 2 * per_row + 2 * C * 4
    tr = _pick_row_tile(R, per_row, _TILE_BUDGET_BYTES)
    steps = pl.cdiv(R, tr)

    def kernel(rho_ref, s_ref, d_ref, o_ref, *maybe_hit):
        rho = rho_ref[0]
        acc = _layer_sum(d_ref, n)
        o_ref[...] = (s_ref[...].astype(jnp.float32) + rho * acc).astype(o_ref.dtype)
        if with_hit:
            maybe_hit[0][...] = _block_hit_count(acc, g, P, R, tr)

    out_shape = [jax.ShapeDtypeStruct((R, C), score.dtype)]
    out_specs = [pl.BlockSpec((tr, C), lambda i: (i, 0))]
    if with_hit:
        out_shape.append(jax.ShapeDtypeStruct((steps, 1), jnp.int32))
        out_specs.append(pl.BlockSpec((1, 1), lambda i: (i, 0)))

    outs = pl.pallas_call(
        kernel,
        out_shape=tuple(out_shape),
        grid=(steps,),
        in_specs=[
            pl.BlockSpec((1,), lambda i: (0,), memory_space=pltpu.SMEM),
            pl.BlockSpec((tr, C), lambda i: (i, 0)),
            pl.BlockSpec((n, tr, C), lambda i: (0, i, 0)),
        ],
        out_specs=tuple(out_specs),
        compiler_params=pltpu.CompilerParams(
            dimension_semantics=("parallel",),
            vmem_limit_bytes=_vmem_limit_bytes(),
        ),
        cost_estimate=pl.CostEstimate(
            flops=int(2 * B * P * (n + 1)),
            transcendentals=0,
            bytes_accessed=int(2 * s.nbytes + d.nbytes),
        ),
    )(rho_w, s, d)

    out = outs[0].reshape(B, La, Lb)
    hit = jnp.sum(outs[1]).astype(jnp.int32) if with_hit else None
    return out, hit


def within_layer_forward(score1, score2, datt1_stack, datt2_stack, rho_w):
    """Mirrors WithinLayer.forward with constr_on_att1 = constr_on_att2 = True.

    Returns ([constrained_score1, constrained_score2], w_hit_cnt).
    If a stack is None (within_constr empty / constraint disabled on that side),
    the corresponding score is returned unchanged (datt == zero in PyTorch).
    """
    rho_w = jnp.asarray(rho_w, jnp.float32).reshape(1)
    w_hit_cnt = jnp.zeros((), jnp.int32)

    if datt1_stack is not None and datt2_stack is not None:
        c1, c2, w_hit_cnt = _constrain_fused(
            score1, score2, datt1_stack, datt2_stack, rho_w)
    else:
        c1, c2 = score1, score2
        if datt1_stack is not None:
            c1, _ = _constrain_single(score1, datt1_stack, rho_w, with_hit=False)
        if datt2_stack is not None:
            c2, w_hit_cnt = _constrain_single(score2, datt2_stack, rho_w, with_hit=True)

    return [c1, c2], w_hit_cnt


if __name__ == "__main__":
    # Small deterministic shapes: batch=2, sent_l1=8, sent_l2=8, n_constraint_layers=2
    B, L1, L2, NL = 2, 8, 8, 2
    key = jax.random.PRNGKey(0)
    k1, k2, k3, k4 = jax.random.split(key, 4)

    score1 = jax.random.normal(k1, (B, L1, L2), dtype=jnp.float32)
    score2 = jax.random.normal(k2, (B, L2, L1), dtype=jnp.float32)
    # stand-in per-layer constraint outputs (what N1/N2 would have produced)
    datt1_stack = jax.random.normal(k3, (NL, B, L1, L2), dtype=jnp.float32)
    datt2_stack = jax.random.normal(k4, (NL, B, L2, L1), dtype=jnp.float32)

    # parameter: rho_w = opt.rho_w (deterministic, requires_grad=False in torch)
    rho_w = jnp.ones((1,), dtype=jnp.float32) * 0.5

    (c1, c2), w_hit_cnt = within_layer_forward(
        score1, score2, datt1_stack, datt2_stack, rho_w
    )
    jax.block_until_ready((c1, c2, w_hit_cnt))

    # pure-JAX reference check
    d1 = jnp.sum(datt1_stack, axis=0)
    d2 = jnp.sum(datt2_stack, axis=0)
    ref1 = score1 + rho_w[0] * d1
    ref2 = score2 + rho_w[0] * d2
    ref_hit = jnp.sum((jnp.sum(d2, axis=(-1, -2)) > 0.0).astype(jnp.int32))

    assert c1.shape == score1.shape and c2.shape == score2.shape
    assert jnp.allclose(c1, ref1, atol=1e-5), "constrained_score1 mismatch"
    assert jnp.allclose(c2, ref2, atol=1e-5), "constrained_score2 mismatch"
    assert int(w_hit_cnt) == int(ref_hit), "w_hit_cnt mismatch"

    print("KERNEL_OK")
</pallas_src>

<mosaic_0001>
module attributes {stable_mosaic.version = 11 : i64} {
  func.func @kernel(%arg0: i32, %arg1: memref<1xf32, #tpu.memory_space<smem>>, %arg2: memref<1x128xf32, #tpu.memory_space<vmem>>, %arg3: memref<1x128xf32, #tpu.memory_space<vmem>>, %arg4: memref<2x1x128xf32, #tpu.memory_space<vmem>>, %arg5: memref<2x1x128xf32, #tpu.memory_space<vmem>>, %arg6: memref<1x128xf32, #tpu.memory_space<vmem>>, %arg7: memref<1x128xf32, #tpu.memory_space<vmem>>, %arg8: memref<1x1xi32, #tpu.memory_space<vmem>>) attributes {dimension_semantics = [#tpu.dimension_semantics<parallel>], iteration_bounds = array<i64: 1>, scalar_prefetch = 0 : i64, scratch_operands = 0 : i64, tpu.core_type = #tpu.core_type<tc>, window_params = [{transform_indices = @transform_0, window_bounds = array<i64: 1>}, {transform_indices = @transform_1, window_bounds = array<i64: 1, 128>}, {transform_indices = @transform_2, window_bounds = array<i64: 1, 128>}, {transform_indices = @transform_3, window_bounds = array<i64: 2, 1, 128>}, {transform_indices = @transform_4, window_bounds = array<i64: 2, 1, 128>}, {transform_indices = @transform_5, window_bounds = array<i64: 1, 128>}, {transform_indices = @transform_6, window_bounds = array<i64: 1, 128>}, {transform_indices = @transform_7, window_bounds = array<i64: 1, 1>}]} {
    %c0 = arith.constant 0 : index
    %0 = memref.load %arg1[%c0] : memref<1xf32, #tpu.memory_space<smem>>
    %c0_0 = arith.constant 0 : index
    %c0_1 = arith.constant 0 : index
    %c0_2 = arith.constant 0 : index
    %1 = vector.load %arg4[%c0_0, %c0_1, %c0_2] : memref<2x1x128xf32, #tpu.memory_space<vmem>>, vector<1x1x128xf32>
    %2 = vector.shape_cast %1 : vector<1x1x128xf32> to vector<1x128xf32>
    %c1 = arith.constant 1 : index
    %c0_3 = arith.constant 0 : index
    %c0_4 = arith.constant 0 : index
    %3 = vector.load %arg4[%c1, %c0_3, %c0_4] : memref<2x1x128xf32, #tpu.memory_space<vmem>>, vector<1x1x128xf32>
    %4 = vector.shape_cast %3 : vector<1x1x128xf32> to vector<1x128xf32>
    %5 = arith.addf %2, %4 : vector<1x128xf32>
    %c0_5 = arith.constant 0 : index
    %c0_6 = arith.constant 0 : index
    %6 = vector.load %arg2[%c0_5, %c0_6] : memref<1x128xf32, #tpu.memory_space<vmem>>, vector<1x128xf32>
    %7 = vector.broadcast %0 : f32 to vector<1x128xf32>
    %8 = arith.mulf %7, %5 : vector<1x128xf32>
    %9 = arith.addf %6, %8 : vector<1x128xf32>
    %c0_7 = arith.constant 0 : index
    %c0_8 = arith.constant 0 : index
    %10 = vector.load %arg6[%c0_7, %c0_8] : memref<1x128xf32, #tpu.memory_space<vmem>>, vector<1x128xf32>
    tpu.vector_store %arg6[%c0_7, %c0_8], %9 {strides = array<i32>} : memref<1x128xf32, #tpu.memory_space<vmem>>, vector<1x128xf32>,
    %c0_9 = arith.constant 0 : index
    %c0_10 = arith.constant 0 : index
    %c0_11 = arith.constant 0 : index
    %11 = vector.load %arg5[%c0_9, %c0_10, %c0_11] : memref<2x1x128xf32, #tpu.memory_space<vmem>>, vector<1x1x128xf32>
    %12 = vector.shape_cast %11 : vector<1x1x128xf32> to vector<1x128xf32>
    %c1_12 = arith.constant 1 : index
    %c0_13 = arith.constant 0 : index
    %c0_14 = arith.constant 0 : index
    %13 = vector.load %arg5[%c1_12, %c0_13, %c0_14] : memref<2x1x128xf32, #tpu.memory_space<vmem>>, vector<1x1x128xf32>
    %14 = vector.shape_cast %13 : vector<1x1x128xf32> to vector<1x128xf32>
    %15 = arith.addf %12, %14 : vector<1x128xf32>
    %c0_15 = arith.constant 0 : index
    %c0_16 = arith.constant 0 : index
    %16 = vector.load %arg3[%c0_15, %c0_16] : memref<1x128xf32, #tpu.memory_space<vmem>>, vector<1x128xf32>
    %17 = vector.broadcast %0 : f32 to vector<1x128xf32>
    %18 = arith.mulf %17, %15 : vector<1x128xf32>
    %19 = arith.addf %16, %18 : vector<1x128xf32>
    %c0_17 = arith.constant 0 : index
    %c0_18 = arith.constant 0 : index
    %20 = vector.load %arg7[%c0_17, %c0_18] : memref<1x128xf32, #tpu.memory_space<vmem>>, vector<1x128xf32>
    tpu.vector_store %arg7[%c0_17, %c0_18], %19 {strides = array<i32>} : memref<1x128xf32, #tpu.memory_space<vmem>>, vector<1x128xf32>,
    %21 = tpu.iota {dimensions = array<i32: 0>} : vector<1x1xi32>
    %c1_i32 = arith.constant 1 : i32
    %22 = arith.muli %arg0, %c1_i32 : i32
    %23 = vector.broadcast %22 : i32 to vector<1x1xi32>
    %24 = arith.addi %21, %23 : vector<1x1xi32>
    %c1_i32_19 = arith.constant 1 : i32
    %25 = vector.broadcast %c1_i32_19 : i32 to vector<1x1xi32>
    %26 = arith.cmpi slt, %24, %25 : vector<1x1xi32>
    %c0_i32 = arith.constant 0 : i32
    %27 = vector.broadcast %c0_i32 : i32 to vector<1x1xi32>
    %28 = vector.extract_strided_slice %15 {offsets = [0, 0], sizes = [1, 64], strides = [1, 1]} : vector<1x128xf32> to vector<1x64xf32>
    %cst = arith.constant dense<0.000000e+00> : vector<1xf32>
    %29 = vector.multi_reduction <add>, %28, %cst [1] : vector<1x64xf32> to vector<1xf32>
    %30 = vector.shape_cast %29 : vector<1xf32> to vector<1x1xf32>
    %cst_20 = arith.constant 0.000000e+00 : f32
    %31 = vector.broadcast %cst_20 : f32 to vector<1x1xf32>
    %32 = arith.cmpf ogt, %30, %31 : vector<1x1xf32>
    %33 = arith.andi %26, %32 : vector<1x1xi1>
    %c1_i32_21 = arith.constant 1 : i32
    %c0_i32_22 = arith.constant 0 : i32
    %34 = vector.broadcast %c1_i32_21 : i32 to vector<1x1xi32>
    %35 = vector.broadcast %c0_i32_22 : i32 to vector<1x1xi32>
    %36 = arith.select %33, %34, %35 : vector<1x1xi1>, vector<1x1xi32>
    %cst_23 = arith.constant dense<0> : vector<1xi32>
    %37 = vector.multi_reduction <add>, %36, %cst_23 [0] : vector<1x1xi32> to vector<1xi32>
    %38 = vector.shape_cast %37 : vector<1xi32> to vector<1x1xi32>
    %39 = arith.addi %27, %38 : vector<1x1xi32>
    %40 = vector.extract_strided_slice %15 {offsets = [0, 64], sizes = [1, 64], strides = [1, 1]} : vector<1x128xf32> to vector<1x64xf32>
    %cst_24 = arith.constant dense<0.000000e+00> : vector<1xf32>
    %41 = vector.multi_reduction <add>, %40, %cst_24 [1] : vector<1x64xf32> to vector<1xf32>
    %42 = vector.shape_cast %41 : vector<1xf32> to vector<1x1xf32>
    %cst_25 = arith.constant 0.000000e+00 : f32
    %43 = vector.broadcast %cst_25 : f32 to vector<1x1xf32>
    %44 = arith.cmpf ogt, %42, %43 : vector<1x1xf32>
    %45 = arith.andi %26, %44 : vector<1x1xi1>
    %c1_i32_26 = arith.constant 1 : i32
    %c0_i32_27 = arith.constant 0 : i32
    %46 = vector.broadcast %c1_i32_26 : i32 to vector<1x1xi32>
    %47 = vector.broadcast %c0_i32_27 : i32 to vector<1x1xi32>
    %48 = arith.select %45, %46, %47 : vector<1x1xi1>, vector<1x1xi32>
    %cst_28 = arith.constant dense<0> : vector<1xi32>
    %49 = vector.multi_reduction <add>, %48, %cst_28 [0] : vector<1x1xi32> to vector<1xi32>
    %50 = vector.shape_cast %49 : vector<1xi32> to vector<1x1xi32>
    %51 = arith.addi %39, %50 : vector<1x1xi32>
    %c0_29 = arith.constant 0 : index
    %c0_30 = arith.constant 0 : index
    %52 = vector.load %arg8[%c0_29, %c0_30] : memref<1x1xi32, #tpu.memory_space<vmem>>, vector<1x1xi32>
    tpu.vector_store %arg8[%c0_29, %c0_30], %51 {strides = array<i32>} : memref<1x1xi32, #tpu.memory_space<vmem>>, vector<1x1xi32>,
    return
  }
  func.func @transform_0(%arg0: i32) -> i32 {
    %c0_i32 = arith.constant 0 : i32
    %c0_i32_0 = arith.constant 0 : i32
    return %c0_i32 : i32
  }
  func.func @transform_1(%arg0: i32) -> (i32, i32) {
    %c0_i32 = arith.constant 0 : i32
    %c0_i32_0 = arith.constant 0 : i32
    return %arg0, %c0_i32 : i32, i32
  }
  func.func @transform_2(%arg0: i32) -> (i32, i32) {
    %c0_i32 = arith.constant 0 : i32
    %c0_i32_0 = arith.constant 0 : i32
    return %arg0, %c0_i32 : i32, i32
  }
  func.func @transform_3(%arg0: i32) -> (i32, i32, i32) {
    %c0_i32 = arith.constant 0 : i32
    %c0_i32_0 = arith.constant 0 : i32
    %c0_i32_1 = arith.constant 0 : i32
    return %c0_i32, %arg0, %c0_i32_0 : i32, i32, i32
  }
  func.func @transform_4(%arg0: i32) -> (i32, i32, i32) {
    %c0_i32 = arith.constant 0 : i32
    %c0_i32_0 = arith.constant 0 : i32
    %c0_i32_1 = arith.constant 0 : i32
    return %c0_i32, %arg0, %c0_i32_0 : i32, i32, i32
  }
  func.func @transform_5(%arg0: i32) -> (i32, i32) {
    %c0_i32 = arith.constant 0 : i32
    %c0_i32_0 = arith.constant 0 : i32
    return %arg0, %c0_i32 : i32, i32
  }
  func.func @transform_6(%arg0: i32) -> (i32, i32) {
    %c0_i32 = arith.constant 0 : i32
    %c0_i32_0 = arith.constant 0 : i32
    return %arg0, %c0_i32 : i32, i32
  }
  func.func @transform_7(%arg0: i32) -> (i32, i32) {
    %c0_i32 = arith.constant 0 : i32
    %c0_i32_0 = arith.constant 0 : i32
    return %arg0, %c0_i32 : i32, i32
  }
}

</mosaic_0001>

<llo_original>
// kernel: tpu_custom_call.1
$region0: #{tpu_custom_call.1}
  #allocation0 [shape = 'u32[]', space=smem, size = 0x4, offset = 0x4, fixed_abs, tag = 'smem constant byte address 0x4 - core index']
  #allocation1 [shape = 'u32[144,128]{1,0:T(1,128)}', space=vmem, size = 0x12000, scoped, tag = 'internal scratch']
  #allocation2 [shape = 'f32[1]{0:T(128)S(6)}', space=smem, size = 0x200, scoped, tag = 'scoped memory for tpu_custom_call.1']
  %s0 = inlined_call_operand.<no memory space> [shape: f32[1], index: 0, kind: input, shape index: {}]
  %s1 = inlined_call_operand.vmem [shape: f32[1,128], index: 1, kind: input, shape index: {}]
  %s2 = inlined_call_operand.vmem [shape: f32[1,128], index: 2, kind: input, shape index: {}]
  %s3 = inlined_call_operand.vmem [shape: f32[2,1,128], index: 3, kind: input, shape index: {}]
  %s4 = inlined_call_operand.vmem [shape: f32[2,1,128], index: 4, kind: input, shape index: {}]
  %s5 = inlined_call_operand.hbm [shape: f32[1,128], index: 5, kind: output, shape index: {0}]
  %s6 = inlined_call_operand.hbm [shape: f32[1,128], index: 6, kind: output, shape index: {1}]
  %s7 = inlined_call_operand.hbm [shape: s32[1,1], index: 7, kind: output, shape index: {2}]
  %8 = xla_tuple %s5, %s6, %s7
  %s9 = sld [smem:[#allocation0]]
  $region46: #{tpu_custom_call.1} parent=0
    _
  %s11 = ssub.s32 1, %s9
  %s12 = scalar_select 0, %s11, %s9
  %13 = sst [smem:[#allocation2]] %s0
  $region1: #{tpu_custom_call.1} parent=0
    #allocation3 [shape = 'u8[512]{0}', space=vmem, size = 0x400, scoped, tag = 'output window, operand 0, single buffered']
    #allocation4 [shape = 's32[1]{0}', space=sflag, size = 0x4, scoped, tag = 'scoped memory for tpu_custom_call.1']
    #allocation5 [shape = 'u8[512]{0}', space=vmem, size = 0x400, scoped, tag = 'output window, operand 1, single buffered']
    #allocation6 [shape = 's32[1]{0}', space=sflag, size = 0x4, scoped, tag = 'scoped memory for tpu_custom_call.1']
    #allocation7 [shape = 'u8[512]{0}', space=vmem, size = 0x400, scoped, tag = 'output window, operand 2, single buffered']
    %14 = vsyncpa [#allocation4], 0
    %15 = vsyncpa [#allocation6], 0
    // Predicated region
    $region2: #{tpu_custom_call.1} parent=1 // pred_check
      _
    $region3: #{tpu_custom_call.1} parent=1 // pred_check_branch
      %17 = sbr.rel (0) target = $region5
    $region4: #{tpu_custom_call.1} parent=1 // pred_region
      _
    $region5: #{tpu_custom_call.1} parent=1 // pred_fallthru
      _
    // Predicated region
    $region6: #{tpu_custom_call.1} parent=1 // pred_check
      _
    $region7: #{tpu_custom_call.1} parent=1 // pred_check_branch
      %19 = sbr.rel (0) target = $region9
    $region8: #{tpu_custom_call.1} parent=1 // pred_region
      _
    $region9: #{tpu_custom_call.1} parent=1 // pred_fallthru
      _
    // Predicated region
    $region10: #{tpu_custom_call.1} parent=1 // pred_check
      _
    $region11: #{tpu_custom_call.1} parent=1 // pred_check_branch
      %21 = sbr.rel (0) target = $region13
    $region12: #{tpu_custom_call.1} parent=1 // pred_region
      _
    $region13: #{tpu_custom_call.1} parent=1 // pred_fallthru
      _
    // Predicated region
    $region14: #{tpu_custom_call.1} parent=1 // pred_check
      _
    $region15: #{tpu_custom_call.1} parent=1 // pred_check_branch
      %23 = sbr.rel (0) target = $region17
    $region16: #{tpu_custom_call.1} parent=1 // pred_region
      _
    $region17: #{tpu_custom_call.1} parent=1 // pred_fallthru
      _
    // Predicated region
    $region18: #{tpu_custom_call.1} parent=1 // pred_check
      _
    $region19: #{tpu_custom_call.1} parent=1 // pred_check_branch
      %25 = sbr.rel (0) target = $region21
    $region20: #{tpu_custom_call.1} parent=1 // pred_region
      _
    $region21: #{tpu_custom_call.1} parent=1 // pred_fallthru
      _
    %s26 = sld [smem:[#allocation2]]
    %v27 = vld [vmem:[%s3] sm:$0x1]
    %s28 = scalar_lea.vmem %s3, 1
    %v29 = vld [vmem:[%s28] sm:$0x1]
    %v30 = vadd.f32 %v27, %v29
    %v31 = vld [vmem:[%s1] sm:$0x1]
    %v32 = vstv %s26
    %v33 = vmul.f32 %v32, %v30
    %v34 = vadd.f32 %v31, %v33
    %35 = vst [vmem:[#allocation3] sm:$0x1] %v34
    %v36 = vld [vmem:[%s4] sm:$0x1]
    %s37 = scalar_lea.vmem %s4, 1
    %v38 = vld [vmem:[%s37] sm:$0x1]
    %v39 = vadd.f32 %v36, %v38
    %v40 = vld [vmem:[%s2] sm:$0x1]
    %v41 = vmul.f32 %v32, %v39
    %v42 = vadd.f32 %v40, %v41
    %43 = vst [vmem:[#allocation5] sm:$0x1] %v42
    %v44 = vlaneseq
    %v45 = vshrl.u32 %v44, 7
    %v46 = vstv 0
    %v47 = vadd.s32 %v45, %v46
    %vm48 = vcmp.lt.s32.totalorder %v47, 1
    %vm49 = vcmask 516096
    %v50 = vsel %vm49, %v39, 0.0
    %51 = vadd.xlane.f32.xlu0 %v50
    %v52 = vpop.xlane.xlu0 %51
    %vm53 = vcmp.gt.f32.partialorder %v52, 0.0
    %vm54 = vmand %vm48, %vm53
    %v55 = vsel %vm54, 1, 0
    %v57 = vlaneseq
    %v58 = vshrl.u32 %v57, 7
    %v59 = vsub.s32 0, %v58
    %v60 = vrot.slane %v39, %v59
    %61 = vrot.lane.b32.xlu0 %v60, 64
    %v62 = vpop.permute.xlu0 %61
    %v64 = vsel %vm49, %v62, 0.0
    %65 = vadd.xlane.f32.xlu0 %v64
    %v66 = vpop.xlane.xlu0 %65
    %vm67 = vcmp.gt.f32.partialorder %v66, 0.0
    %vm68 = vmand %vm48, %vm67
    %v69 = vsel %vm68, 1, 0
    %v70 = vadd.s32 %v55, %v69
    %vm71 = vcmask 0
    %72 = vst.msk [vmem:[#allocation7] sm:$0x1] %vm71, %v70
    // Predicated region
    $region22: #{tpu_custom_call.1} parent=1 // pred_check
      _
    $region23: #{tpu_custom_call.1} parent=1 // pred_check_branch
      %74 = sbr.rel (0) target = $region25
    $region24: #{tpu_custom_call.1} parent=1 // pred_region
      %s76 = ssub.s32 16, 16
      %77 = vsyncadd [#allocation4], %s76
      %s79 = sshll.u32 [#allocation3], 4
      %s80 = int_to_ptr.vmem [resolvable:$true] %s79
      %82 = dma.vmem_to_hbm [thread:$0]  %s80, 16, %s5, [#allocation4]
    $region25: #{tpu_custom_call.1} parent=1 // pred_fallthru
      _
    // Predicated region
    $region26: #{tpu_custom_call.1} parent=1 // pred_check
      _
    $region27: #{tpu_custom_call.1} parent=1 // pred_check_branch
      %84 = sbr.rel (0) target = $region29
    $region28: #{tpu_custom_call.1} parent=1 // pred_region
      %s86 = ssub.s32 16, 16
      %87 = vsyncadd [#allocation6], %s86
      %s89 = sshll.u32 [#allocation5], 4
      %s90 = int_to_ptr.vmem [resolvable:$true] %s89
      %92 = dma.vmem_to_hbm [thread:$0]  %s90, 16, %s6, [#allocation6]
    $region29: #{tpu_custom_call.1} parent=1 // pred_fallthru
      _
    // Predicated region
    $region30: #{tpu_custom_call.1} parent=1 // pred_check
      _
    $region31: #{tpu_custom_call.1} parent=1 // pred_check_branch
      %94 = sbr.rel (0) target = $region33
    $region32: #{tpu_custom_call.1} parent=1 // pred_region
      %s96 = ssub.s32 16, 16
      %97 = vsyncadd [#allocation6], %s96
      %s99 = sshll.u32 [#allocation7], 4
      %s100 = int_to_ptr.vmem [resolvable:$true] %s99
      %102 = dma.vmem_to_hbm [thread:$0]  %s100, 16, %s7, [#allocation6]
    $region33: #{tpu_custom_call.1} parent=1 // pred_fallthru
      _
    // Predicated region
    $region34: #{tpu_custom_call.1} parent=1 // pred_check
      _
    $region35: #{tpu_custom_call.1} parent=1 // pred_check_branch
      %104 = sbr.rel (0) target = $region37
    $region36: #{tpu_custom_call.1} parent=1 // pred_region
      %105 = dma.done [#allocation4], 16
    $region37: #{tpu_custom_call.1} parent=1 // pred_fallthru
      _
    // Predicated region
    $region38: #{tpu_custom_call.1} parent=1 // pred_check
      _
    $region39: #{tpu_custom_call.1} parent=1 // pred_check_branch
      %107 = sbr.rel (0) target = $region41
    $region40: #{tpu_custom_call.1} parent=1 // pred_region
      %108 = dma.done [#allocation6], 16
    $region41: #{tpu_custom_call.1} parent=1 // pred_fallthru
      _
    // Predicated region
    $region42: #{tpu_custom_call.1} parent=1 // pred_check
      _
    $region43: #{tpu_custom_call.1} parent=1 // pred_check_branch
      %110 = sbr.rel (0) target = $region45
    $region44: #{tpu_custom_call.1} parent=1 // pred_region
      %111 = dma.done [#allocation6], 16
    $region45: #{tpu_custom_call.1} parent=1 // pred_fallthru
      _
    %112 = vsyncpa [#allocation4], 1
    %113 = vsyncpa [#allocation6], 1

</llo_original>
